<compile_context>
chip_gen: v7x
topology: tpu7x:2x2x1
jax: 0.10.0
libtpu: 0.0.40
codegen_flags: <defaults>
</compile_context>

<pallas_src>
import functools

import jax
import jax.numpy as jnp
import numpy as np
from jax.experimental import pallas as pl
from jax.experimental.pallas import tpu as pltpu

_WIDTH_CANDIDATES = (1024, 512, 256, 128)  # lane-dense slab widths (multiples of 128)
_MIN_PALLAS_BYTES = 1 << 20                # below this, XLA's fused elementwise wins


def _logit_scaling_kernel(scale_ref, x_ref, o_ref, *, max_logit_scale):
    # exp + clip on a (1,1) f32 VMEM value (EUP slot; off the VPU/DMA critical
    # path). Multiply in f32, round once on the store -> matches reference.
    scale = jnp.minimum(jnp.exp(scale_ref[...]), max_logit_scale)  # (1, 1) f32
    o_ref[...] = (x_ref[...].astype(jnp.float32) * scale).astype(o_ref.dtype)


def _sublane_packing(itemsize):
    # Rows per packed vreg sublane group: 8 for f32, 16 for bf16, 32 for int8/fp8.
    return 8 * max(1, 4 // max(1, itemsize))


def _round_up(v, m):
    return ((v + m - 1) // m) * m


def _slab_layout(shape):
    """Free (metadata-only) reshape of x into a 2-D (rows, width) slab.

    No padding and no slicing:
      * flat size divisible by 128 -> lane-dense width from _WIDTH_CANDIDATES;
      * otherwise keep the true last dim as the width; a block whose last dim
        equals the full array dim is exempt from the (8,128) rule.
    """
    n = int(np.prod(shape)) if shape else 1
    if n % 128 == 0:
        width = next(w for w in _WIDTH_CANDIDATES if n % w == 0)
    else:
        width = shape[-1]
    return n, n // width, width


def _vmem_budget():
    """(per-buffer tile bytes, scoped-VMEM limit to request) for this chip."""
    try:
        phys = int(getattr(pltpu.get_tpu_info(), "vmem_capacity_bytes", 0)) or (64 << 20)
    except Exception:  # query unavailable -> be conservative (v7x per-TC size)
        phys = 64 << 20
    # Request up to 32 MiB scoped VMEM: safe on every generation (v5e/v6e have
    # 128 MiB physical, v7x 64 MiB). v5e's *default* scoped limit is 16 MiB, so
    # the explicit vmem_limit_bytes below is required for the larger tiles.
    vmem_limit = min(32 << 20, phys // 2)
    # 2x input + 2x output double-buffers in flight, plus headroom.
    per_buffer = vmem_limit // 5
    return per_buffer, vmem_limit


def _choose_tile_rows(rows, width, itemsize, per_buffer_bytes):
    packing = _sublane_packing(itemsize)
    if rows <= packing:
        return rows  # block equals the full row extent -> always a legal shape
    tr = per_buffer_bytes // max(1, width * itemsize)  # amortize ~0.35us/step
    tr = max(packing, (tr // packing) * packing)       # dtype-aware sublane packing
    tr = min(tr, _round_up(rows, packing))
    # Keep the 1-D "parallel" grid splittable across v7x's two TensorCores:
    # never a single-tile grid, and avoid small odd tile counts.
    num_tiles = pl.cdiv(rows, tr)
    if num_tiles == 1 and rows >= 2 * packing:
        tr = _round_up(pl.cdiv(rows, 2), packing)
    elif num_tiles % 2 == 1 and num_tiles < 8 and rows >= (num_tiles + 1) * packing:
        tr = _round_up(pl.cdiv(rows, num_tiles + 1), packing)
    return tr


def _scale_value(log_logit_scale, max_logit_scale):
    return jnp.minimum(jnp.exp(jnp.asarray(log_logit_scale, jnp.float32)),
                       jnp.float32(max_logit_scale))


def learnable_logit_scaling(x, log_logit_scale, max_logit_scale=100.0,
                            *, min_pallas_bytes=_MIN_PALLAS_BYTES,
                            donate_x=False):
    """clip(exp(log_logit_scale), max_logit_scale) * x via a tiled Pallas TPU kernel."""
    orig_shape = x.shape
    itemsize = jnp.dtype(x.dtype).itemsize

    per_buffer, vmem_limit = _vmem_budget()
    n, rows, width = _slab_layout(orig_shape)
    packing = _sublane_packing(itemsize)

    # Tiny or degenerate layouts: a fused XLA elementwise op is strictly faster
    # than paying kernel-launch + grid-setup overhead (and can fuse upstream).
    too_small = n * itemsize < min_pallas_bytes
    too_wide = min(rows, packing) * width * itemsize > per_buffer
    if x.ndim == 0 or too_small or too_wide:
        scale = _scale_value(log_logit_scale, max_logit_scale)
        return (x.astype(jnp.float32) * scale).astype(x.dtype)

    slab = x.reshape(rows, width)  # metadata-only reshape (no HBM copy)
    tile_rows = _choose_tile_rows(rows, width, itemsize, per_buffer)
    grid = (pl.cdiv(rows, tile_rows),)

    log_scale = jnp.asarray(log_logit_scale, jnp.float32).reshape(1, 1)
    kernel = functools.partial(_logit_scaling_kernel,
                               max_logit_scale=float(max_logit_scale))

    pallas_kwargs = dict(
        out_shape=jax.ShapeDtypeStruct((rows, width), x.dtype),
        grid=grid,
        in_specs=[
            pl.BlockSpec((1, 1), lambda i: (0, 0)),              # scalar parameter
            pl.BlockSpec((tile_rows, width), lambda i: (i, 0)),  # x row tile
        ],
        out_specs=pl.BlockSpec((tile_rows, width), lambda i: (i, 0)),
        compiler_params=pltpu.CompilerParams(
            dimension_semantics=("parallel",),
            vmem_limit_bytes=vmem_limit,
        ),
        cost_estimate=pl.CostEstimate(
            flops=n, transcendentals=1, bytes_accessed=2 * n * itemsize),
    )
    if donate_x:
        # Alias the slab input to the output (halves peak HBM footprint) — only
        # a win when the caller's x is actually donatable (e.g. a temporary in
        # a larger jit); otherwise XLA inserts a protective copy, so opt-in.
        pallas_kwargs["input_output_aliases"] = {1: 0}

    out_slab = pl.pallas_call(kernel, **pallas_kwargs)(log_scale, slab)
    return out_slab.reshape(orig_shape)


def _reference(x, log_logit_scale, max_logit_scale):
    scale = _scale_value(log_logit_scale, max_logit_scale)
    return (x.astype(jnp.float32) * scale).astype(x.dtype)


if __name__ == "__main__":
    # Parameter init matching the module: log_logit_scale = log(1 / 0.07), max = 100.
    logit_scale_init = 1.0 / 0.07
    max_logit_scale = 100.0
    log_logit_scale = jnp.float32(np.log(logit_scale_init))

    key = jax.random.PRNGKey(0)
    k1, k2, k3, k4 = jax.random.split(key, 4)

    # 1) Module-like small input (batch=2, channels=4, 16x16). n=2048 is a
    #    multiple of 128 -> zero-copy lane-dense slab (2, 1024). Force the
    #    Pallas path so the kernel itself is exercised at this size.
    x1 = jax.random.normal(k1, (2, 4, 16, 16), dtype=jnp.float32)
    o1 = jax.block_until_ready(
        learnable_logit_scaling(x1, log_logit_scale, max_logit_scale,
                                min_pallas_bytes=0))
    np.testing.assert_allclose(
        np.asarray(o1),
        np.asarray(_reference(x1, log_logit_scale, max_logit_scale)),
        rtol=1e-5, atol=1e-6)

    # 2) Unaligned flat size (n % 128 != 0): no pad/copy, block last dim equals
    #    the full array last dim (40); multi-tile ragged grid.
    x2 = jax.random.normal(k2, (8, 33, 40), dtype=jnp.float32)
    o2 = jax.block_until_ready(
        learnable_logit_scaling(x2, log_logit_scale, max_logit_scale,
                                min_pallas_bytes=0))
    np.testing.assert_allclose(
        np.asarray(o2),
        np.asarray(_reference(x2, log_logit_scale, max_logit_scale)),
        rtol=1e-5, atol=1e-6)

    # 3) bf16 path: in-kernel f32 multiply, single rounding on the store.
    x3 = jax.random.normal(k3, (64, 256), dtype=jnp.bfloat16)
    o3 = jax.block_until_ready(
        learnable_logit_scaling(x3, log_logit_scale, max_logit_scale,
                                min_pallas_bytes=0))
    np.testing.assert_allclose(
        np.asarray(o3).astype(np.float32),
        np.asarray(_reference(x3, log_logit_scale, max_logit_scale)).astype(np.float32),
        rtol=2e-2, atol=2e-2)

    # 4) Tiny-input fast path (default threshold -> fused XLA elementwise, no kernel).
    x4 = jax.random.normal(k4, (8, 32), dtype=jnp.float32)
    o4 = jax.block_until_ready(
        learnable_logit_scaling(x4, log_logit_scale, max_logit_scale))
    np.testing.assert_allclose(
        np.asarray(o4),
        np.asarray(_reference(x4, log_logit_scale, max_logit_scale)),
        rtol=1e-5, atol=1e-6)

    print("KERNEL_OK")
</pallas_src>

<mosaic_0001>
module attributes {stable_mosaic.version = 11 : i64} {
  func.func @_logit_scaling_kernel(%arg0: i32, %arg1: memref<1x1xf32, #tpu.memory_space<vmem>>, %arg2: memref<2x1024xf32, #tpu.memory_space<vmem>>, %arg3: memref<2x1024xf32, #tpu.memory_space<vmem>>) attributes {dimension_semantics = [#tpu.dimension_semantics<parallel>], iteration_bounds = array<i64: 1>, scalar_prefetch = 0 : i64, scratch_operands = 0 : i64, tpu.core_type = #tpu.core_type<tc>, window_params = [{pipeline_mode = #tpu.pipeline_mode<synchronous>, transform_indices = @transform_0, window_bounds = array<i64: 1, 1>}, {transform_indices = @transform_1, window_bounds = array<i64: 2, 1024>}, {transform_indices = @transform_2, window_bounds = array<i64: 2, 1024>}]} {
    %c0 = arith.constant 0 : index
    %c0_0 = arith.constant 0 : index
    %0 = vector.load %arg1[%c0, %c0_0] : memref<1x1xf32, #tpu.memory_space<vmem>>, vector<1x1xf32>
    %1 = math.exp %0 : vector<1x1xf32>
    %cst = arith.constant 1.000000e+02 : f32
    %2 = vector.broadcast %cst : f32 to vector<1x1xf32>
    %3 = arith.minimumf %1, %2 : vector<1x1xf32>
    %c0_1 = arith.constant 0 : index
    %c0_2 = arith.constant 0 : index
    %4 = vector.load %arg2[%c0_1, %c0_2] : memref<2x1024xf32, #tpu.memory_space<vmem>>, vector<2x1024xf32>
    %5 = vector.broadcast %3 : vector<1x1xf32> to vector<2x1024xf32>
    %6 = arith.mulf %4, %5 : vector<2x1024xf32>
    %c0_3 = arith.constant 0 : index
    %c0_4 = arith.constant 0 : index
    %7 = vector.load %arg3[%c0_3, %c0_4] : memref<2x1024xf32, #tpu.memory_space<vmem>>, vector<2x1024xf32>
    tpu.vector_store %arg3[%c0_3, %c0_4], %6 {strides = array<i32>} : memref<2x1024xf32, #tpu.memory_space<vmem>>, vector<2x1024xf32>,
    return
  }
  func.func @transform_0(%arg0: i32) -> (i32, i32) {
    %c0_i32 = arith.constant 0 : i32
    %c0_i32_0 = arith.constant 0 : i32
    %c0_i32_1 = arith.constant 0 : i32
    return %c0_i32, %c0_i32_0 : i32, i32
  }
  func.func @transform_1(%arg0: i32) -> (i32, i32) {
    %c0_i32 = arith.constant 0 : i32
    %c0_i32_0 = arith.constant 0 : i32
    return %arg0, %c0_i32 : i32, i32
  }
  func.func @transform_2(%arg0: i32) -> (i32, i32) {
    %c0_i32 = arith.constant 0 : i32
    %c0_i32_0 = arith.constant 0 : i32
    return %arg0, %c0_i32 : i32, i32
  }
}

</mosaic_0001>

<llo_original>
// kernel: tpu_custom_call.1
$region0: #{tpu_custom_call.1}
  #allocation0 [shape = 'u32[]', space=smem, size = 0x4, offset = 0x4, fixed_abs, tag = 'smem constant byte address 0x4 - core index']
  #allocation1 [shape = 'u32[144,128]{1,0:T(1,128)}', space=vmem, size = 0x12000, scoped, tag = 'internal scratch']
  #allocation2 [shape = 'f32[1,1]{1,0:T(1,128)S(1)}', space=vmem, size = 0x200, scoped, tag = 'scoped memory for tpu_custom_call.1']
  %s0 = inlined_call_operand.<no memory space> [shape: f32[1,1], index: 0, kind: input, shape index: {}]
  %s1 = inlined_call_operand.hbm [shape: f32[2,1024], index: 1, kind: input, shape index: {}]
  %s2 = inlined_call_operand.hbm [shape: f32[2,1024], index: 2, kind: output, shape index: {}]
  %s3 = sld [smem:[#allocation0]]
  $region22: #{tpu_custom_call.1} parent=0
    _
  %s5 = ssub.s32 1, %s3
  %s6 = scalar_select 0, %s5, %s3
  %v7 = vstv %s0
  %8 = vst [vmem:[#allocation2] sm:$0x1] %v7
  $region1: #{tpu_custom_call.1} parent=0
    #allocation3 [shape = 'u8[8192]{0}', space=vmem, size = 0x2000, scoped, tag = 'input window, operand 1, single buffered']
    #allocation4 [shape = 's32[1]{0}', space=sflag, size = 0x4, scoped, tag = 'scoped memory for tpu_custom_call.1']
    #allocation5 [shape = 's32[1]{0}', space=sflag, size = 0x4, scoped, tag = 'scoped memory for tpu_custom_call.1']
    #allocation6 [shape = 'u8[8192]{0}', space=vmem, size = 0x2000, scoped, tag = 'output window, operand 0, single buffered']
    %9 = vsyncpa [#allocation4], 0
    %10 = vsyncpa [#allocation5], 0
    // Predicated region
    $region2: #{tpu_custom_call.1} parent=1 // pred_check
      _
    $region3: #{tpu_custom_call.1} parent=1 // pred_check_branch
      %12 = sbr.rel (0) target = $region5
    $region4: #{tpu_custom_call.1} parent=1 // pred_region
      _
    $region5: #{tpu_custom_call.1} parent=1 // pred_fallthru
      _
    // Predicated region
    $region6: #{tpu_custom_call.1} parent=1 // pred_check
      _
    $region7: #{tpu_custom_call.1} parent=1 // pred_check_branch
      %14 = sbr.rel (0) target = $region9
    $region8: #{tpu_custom_call.1} parent=1 // pred_region
      %s16 = ssub.s32 256, 256
      %17 = vsyncadd [#allocation4], %s16
      %s19 = sshll.u32 [#allocation3], 4
      %s20 = int_to_ptr.vmem [resolvable:$true] %s19
      %22 = dma.hbm_to_vmem [thread:$0]  %s1, 256, %s20, [#allocation4]
    $region9: #{tpu_custom_call.1} parent=1 // pred_fallthru
      _
    // Predicated region
    $region10: #{tpu_custom_call.1} parent=1 // pred_check
      _
    $region11: #{tpu_custom_call.1} parent=1 // pred_check_branch
      %24 = sbr.rel (0) target = $region13
    $region12: #{tpu_custom_call.1} parent=1 // pred_region
      %25 = dma.done [#allocation4], 256
    $region13: #{tpu_custom_call.1} parent=1 // pred_fallthru
      _
    %v26 = vld [vmem:[#allocation2] sm:$0x1]
    %v27 = vmul.f32 %v26, 1.442695
    %v28 = vpow.pop %v27
    %v29 = vmin.f32 %v28, 100.0
    %v30 = vld [vmem:[#allocation3] sm:$0xff]
    %v31 = vld [vmem:[#allocation3 + $0x8] sm:$0xff]
    %v33 = vlaneseq
    %v34 = vshrl.u32 %v33, 7
    %v35 = vsub.s32 0, %v34
    %v36 = vrot.slane %v29, %v35
    %37 = vset.pattern.permute.xlu0 0
    %38 = vperm.xlu0 %37, %v36
    %v39 = vpop.permute.xlu0 %38
    %v41 = vmul.f32 %v30, %v39
    %v42 = vmul.f32 %v31, %v39
    %43 = vst [vmem:[#allocation6] sm:$0xff] %v41
    %44 = vst [vmem:[#allocation6 + $0x8] sm:$0xff] %v42
    // Predicated region
    $region14: #{tpu_custom_call.1} parent=1 // pred_check
      _
    $region15: #{tpu_custom_call.1} parent=1 // pred_check_branch
      %46 = sbr.rel (0) target = $region17
    $region16: #{tpu_custom_call.1} parent=1 // pred_region
      %s48 = ssub.s32 256, 256
      %49 = vsyncadd [#allocation5], %s48
      %s51 = sshll.u32 [#allocation6], 4
      %s52 = int_to_ptr.vmem [resolvable:$true] %s51
      %54 = dma.vmem_to_hbm [thread:$0]  %s52, 256, %s2, [#allocation5]
    $region17: #{tpu_custom_call.1} parent=1 // pred_fallthru
      _
    // Predicated region
    $region18: #{tpu_custom_call.1} parent=1 // pred_check
      _
    $region19: #{tpu_custom_call.1} parent=1 // pred_check_branch
      %56 = sbr.rel (0) target = $region21
    $region20: #{tpu_custom_call.1} parent=1 // pred_region
      %57 = dma.done [#allocation5], 256
    $region21: #{tpu_custom_call.1} parent=1 // pred_fallthru
      _
    %58 = vsyncpa [#allocation4], 1
    %59 = vsyncpa [#allocation5], 1

</llo_original>
